<compile_context>
chip_gen: v7x
topology: tpu7x:2x2x1
jax: 0.10.0
libtpu: 0.0.40
codegen_flags: <defaults>
</compile_context>

<pallas_src>
import jax
import jax.numpy as jnp
from jax.experimental import pallas as pl
from jax.experimental.pallas import tpu as pltpu

_LANE = 128
_BN_EPS = 1e-5


def _fedgen_kernel(z_ref, w1_ref, gamma_ref, beta_ref, w2_ref, b2_ref, o_ref):
    # ---- fc1: Linear (bias omitted: BN batch-mean subtraction cancels it) ----
    h = jnp.dot(z_ref[...], w1_ref[...],
                preferred_element_type=jnp.float32)            # [B, Hp] f32

    # ---- BatchNorm1d (training mode, biased batch stats, eps=1e-5) ----------
    # Single-pass variance + folded scale/shift.
    mean = jnp.mean(h, axis=0, keepdims=True)                  # [1, Hp]
    mean_sq = jnp.mean(h * h, axis=0, keepdims=True)           # [1, Hp]
    var = jnp.maximum(mean_sq - mean * mean, 0.0)              # clamp rounding
    scale = gamma_ref[...] * jax.lax.rsqrt(var + _BN_EPS)      # [1, Hp]
    shift = beta_ref[...] - mean * scale                       # [1, Hp]
    h = h * scale + shift                                      # fused mul-add

    # ---- ReLU ----------------------------------------------------------------
    h = jnp.maximum(h, 0.0)

    # ---- fc2: Linear(hidden -> feature tile) ----------------------------------
    o_ref[...] = jnp.dot(h.astype(w2_ref.dtype), w2_ref[...],
                         preferred_element_type=jnp.float32) + b2_ref[...]


def _pad_axis(x, axis, multiple):
    pad = (-x.shape[axis]) % multiple
    if pad == 0:
        return x
    widths = [(0, 0)] * x.ndim
    widths[axis] = (0, pad)
    return jnp.pad(x, widths)


def fedgen_forward(z, w1, gamma, beta, w2, b2, *, compute_dtype=jnp.float32):
    """z: [B, noise_dim+num_classes] f32 -> [B, feature_dim] f32.

    compute_dtype: dtype of the MXU operands (jnp.float32 or jnp.bfloat16).
    Accumulation is always f32; BN/ReLU are computed in f32.
    """
    batch, _ = z.shape
    feature_dim = w2.shape[1]

    # Lane-dense zero padding (Din, H, F -> multiples of 128).
    zp = _pad_axis(z, 1, _LANE).astype(compute_dtype)
    w1p = _pad_axis(_pad_axis(w1, 0, _LANE), 1, _LANE).astype(compute_dtype)
    gp = _pad_axis(gamma, 1, _LANE).astype(jnp.float32)
    bp = _pad_axis(beta, 1, _LANE).astype(jnp.float32)
    w2p = _pad_axis(_pad_axis(w2, 0, _LANE), 1, _LANE).astype(compute_dtype)
    b2p = _pad_axis(b2, 1, _LANE).astype(jnp.float32)

    dp, hp = w1p.shape
    fp = w2p.shape[1]
    tn = _LANE                       # lane-dense output / W2 tile
    grid = (fp // tn,)               # "parallel" -> shards over v7x's 2 TCs

    def _full(shape):
        return pl.BlockSpec(shape, lambda j: (0, 0))

    itemsize = jnp.dtype(compute_dtype).itemsize
    flops = 2 * batch * dp * hp + 2 * batch * hp * fp + 8 * batch * hp
    bytes_accessed = (zp.size + w1p.size + w2p.size) * itemsize \
        + (gp.size + bp.size + b2p.size) * 4 + batch * fp * 4

    out_p = pl.pallas_call(
        _fedgen_kernel,
        out_shape=jax.ShapeDtypeStruct((batch, fp), jnp.float32),
        grid=grid,
        in_specs=[
            _full((batch, dp)),                            # z
            _full((dp, hp)),                               # W1
            _full((1, hp)),                                # gamma
            _full((1, hp)),                                # beta
            pl.BlockSpec((hp, tn), lambda j: (0, j)),      # W2 tile
            pl.BlockSpec((1, tn), lambda j: (0, j)),       # b2 tile
        ],
        out_specs=pl.BlockSpec((batch, tn), lambda j: (0, j)),
        compiler_params=pltpu.CompilerParams(
            dimension_semantics=("parallel",)),
        cost_estimate=pl.CostEstimate(flops=flops, transcendentals=hp,
                                      bytes_accessed=bytes_accessed),
    )(zp, w1p, gp, bp, w2p, b2p)

    return out_p[:, :feature_dim]


def make_params(key, noise_dim, num_classes, hidden_dim, feature_dim):
    """Deterministic synthetic parameters (PyTorch-style uniform fan-in init)."""
    din = noise_dim + num_classes
    k1, k2, k3, k4 = jax.random.split(key, 4)
    bound1 = 1.0 / jnp.sqrt(din)
    bound2 = 1.0 / jnp.sqrt(hidden_dim)
    w1 = jax.random.uniform(k1, (din, hidden_dim), jnp.float32, -bound1, bound1)
    b1 = jax.random.uniform(k2, (1, hidden_dim), jnp.float32, -bound1, bound1)
    gamma = jnp.ones((1, hidden_dim), jnp.float32)      # BatchNorm1d weight
    beta = jnp.zeros((1, hidden_dim), jnp.float32)      # BatchNorm1d bias
    w2 = jax.random.uniform(k3, (hidden_dim, feature_dim), jnp.float32,
                            -bound2, bound2)
    b2 = jax.random.uniform(k4, (1, feature_dim), jnp.float32, -bound2, bound2)
    return w1, b1, gamma, beta, w2, b2


if __name__ == "__main__":
    noise_dim, num_classes, hidden_dim, feature_dim = 32, 10, 64, 128
    batch = 8

    key = jax.random.PRNGKey(0)
    k_param, k_label, k_eps = jax.random.split(key, 3)

    w1, b1, gamma, beta, w2, b2 = make_params(
        k_param, noise_dim, num_classes, hidden_dim, feature_dim)

    # Inputs, built exactly as the torch forward does (glue in plain JAX):
    labels = jax.random.randint(k_label, (batch,), 0, num_classes, jnp.int32)
    eps = jax.random.uniform(k_eps, (batch, noise_dim), jnp.float32)   # torch.rand
    y_one_hot = jax.nn.one_hot(labels, num_classes, dtype=jnp.float32)  # F.one_hot
    z = jnp.concatenate([eps, y_one_hot], axis=1)                       # torch.cat

    # Pure-JAX reference (includes the fc1 bias; BN cancels it exactly).
    h_ref = z @ w1 + b1
    m = h_ref.mean(axis=0, keepdims=True)
    v = ((h_ref - m) ** 2).mean(axis=0, keepdims=True)
    h_ref = (h_ref - m) / jnp.sqrt(v + _BN_EPS) * gamma + beta
    h_ref = jnp.maximum(h_ref, 0.0)
    ref = h_ref @ w2 + b2

    # f32 MXU operands: tight check.
    out = fedgen_forward(z, w1, gamma, beta, w2, b2, compute_dtype=jnp.float32)
    out = jax.block_until_ready(out)
    assert out.shape == (batch, feature_dim)
    assert jnp.allclose(out, ref, atol=1e-4, rtol=1e-4)

    # bf16 MXU operands (v6e/v7x fast path), f32 accumulation: loose check.
    out_bf16 = fedgen_forward(z, w1, gamma, beta, w2, b2,
                              compute_dtype=jnp.bfloat16)
    out_bf16 = jax.block_until_ready(out_bf16)
    assert out_bf16.shape == (batch, feature_dim)
    assert jnp.allclose(out_bf16, ref, atol=1e-1, rtol=1e-1)

    print("KERNEL_OK")
</pallas_src>

<mosaic_0001>
module attributes {stable_mosaic.version = 11 : i64} {
  func.func @_fedgen_kernel(%arg0: i32, %arg1: memref<8x128xf32, #tpu.memory_space<vmem>>, %arg2: memref<128x128xf32, #tpu.memory_space<vmem>>, %arg3: memref<1x128xf32, #tpu.memory_space<vmem>>, %arg4: memref<1x128xf32, #tpu.memory_space<vmem>>, %arg5: memref<128x128xf32, #tpu.memory_space<vmem>>, %arg6: memref<1x128xf32, #tpu.memory_space<vmem>>, %arg7: memref<8x128xf32, #tpu.memory_space<vmem>>) attributes {dimension_semantics = [#tpu.dimension_semantics<parallel>], iteration_bounds = array<i64: 1>, scalar_prefetch = 0 : i64, scratch_operands = 0 : i64, tpu.core_type = #tpu.core_type<tc>, window_params = [{pipeline_mode = #tpu.pipeline_mode<synchronous>, transform_indices = @transform_0, window_bounds = array<i64: 8, 128>}, {pipeline_mode = #tpu.pipeline_mode<synchronous>, transform_indices = @transform_1, window_bounds = array<i64: 128, 128>}, {pipeline_mode = #tpu.pipeline_mode<synchronous>, transform_indices = @transform_2, window_bounds = array<i64: 1, 128>}, {pipeline_mode = #tpu.pipeline_mode<synchronous>, transform_indices = @transform_3, window_bounds = array<i64: 1, 128>}, {transform_indices = @transform_4, window_bounds = array<i64: 128, 128>}, {transform_indices = @transform_5, window_bounds = array<i64: 1, 128>}, {transform_indices = @transform_6, window_bounds = array<i64: 8, 128>}]} {
    %c0 = arith.constant 0 : index
    %c0_0 = arith.constant 0 : index
    %0 = vector.load %arg1[%c0, %c0_0] : memref<8x128xf32, #tpu.memory_space<vmem>>, vector<8x128xf32>
    %c0_1 = arith.constant 0 : index
    %c0_2 = arith.constant 0 : index
    %1 = vector.load %arg2[%c0_1, %c0_2] : memref<128x128xf32, #tpu.memory_space<vmem>>, vector<128x128xf32>
    %cst = arith.constant dense<0.000000e+00> : vector<8x128xf32>
    %2 = tpu.matmul %0, %1, %cst {dimension_numbers = #tpu.dot_dimension_numbers<[1], [0], [0], [1], [0, 0, 1, 1], [], []>} : vector<8x128xf32>, vector<128x128xf32>, vector<8x128xf32> -> vector<8x128xf32>
    %cst_3 = arith.constant dense<0.000000e+00> : vector<128xf32>
    %3 = vector.multi_reduction <add>, %2, %cst_3 [0] : vector<8x128xf32> to vector<128xf32>
    %4 = vector.shape_cast %3 : vector<128xf32> to vector<1x128xf32>
    %cst_4 = arith.constant 8.000000e+00 : f32
    %5 = vector.broadcast %cst_4 : f32 to vector<1x128xf32>
    %6 = arith.divf %4, %5 : vector<1x128xf32>
    %7 = arith.mulf %2, %2 : vector<8x128xf32>
    %cst_5 = arith.constant dense<0.000000e+00> : vector<128xf32>
    %8 = vector.multi_reduction <add>, %7, %cst_5 [0] : vector<8x128xf32> to vector<128xf32>
    %9 = vector.shape_cast %8 : vector<128xf32> to vector<1x128xf32>
    %cst_6 = arith.constant 8.000000e+00 : f32
    %10 = vector.broadcast %cst_6 : f32 to vector<1x128xf32>
    %11 = arith.divf %9, %10 : vector<1x128xf32>
    %12 = arith.mulf %6, %6 : vector<1x128xf32>
    %13 = arith.subf %11, %12 : vector<1x128xf32>
    %cst_7 = arith.constant 0.000000e+00 : f32
    %14 = vector.broadcast %cst_7 : f32 to vector<1x128xf32>
    %15 = arith.maximumf %13, %14 : vector<1x128xf32>
    %c0_8 = arith.constant 0 : index
    %c0_9 = arith.constant 0 : index
    %16 = vector.load %arg3[%c0_8, %c0_9] : memref<1x128xf32, #tpu.memory_space<vmem>>, vector<1x128xf32>
    %cst_10 = arith.constant 9.99999974E-6 : f32
    %17 = vector.broadcast %cst_10 : f32 to vector<1x128xf32>
    %18 = arith.addf %15, %17 : vector<1x128xf32>
    %19 = math.rsqrt %18 : vector<1x128xf32>
    %20 = arith.mulf %16, %19 : vector<1x128xf32>
    %c0_11 = arith.constant 0 : index
    %c0_12 = arith.constant 0 : index
    %21 = vector.load %arg4[%c0_11, %c0_12] : memref<1x128xf32, #tpu.memory_space<vmem>>, vector<1x128xf32>
    %22 = arith.mulf %6, %20 : vector<1x128xf32>
    %23 = arith.subf %21, %22 : vector<1x128xf32>
    %24 = vector.broadcast %20 : vector<1x128xf32> to vector<8x128xf32>
    %25 = arith.mulf %2, %24 : vector<8x128xf32>
    %26 = vector.broadcast %23 : vector<1x128xf32> to vector<8x128xf32>
    %27 = arith.addf %25, %26 : vector<8x128xf32>
    %cst_13 = arith.constant 0.000000e+00 : f32
    %28 = vector.broadcast %cst_13 : f32 to vector<8x128xf32>
    %29 = arith.maximumf %27, %28 : vector<8x128xf32>
    %c0_14 = arith.constant 0 : index
    %c0_15 = arith.constant 0 : index
    %30 = vector.load %arg5[%c0_14, %c0_15] : memref<128x128xf32, #tpu.memory_space<vmem>>, vector<128x128xf32>
    %cst_16 = arith.constant dense<0.000000e+00> : vector<8x128xf32>
    %31 = tpu.matmul %29, %30, %cst_16 {dimension_numbers = #tpu.dot_dimension_numbers<[1], [0], [0], [1], [0, 0, 1, 1], [], []>} : vector<8x128xf32>, vector<128x128xf32>, vector<8x128xf32> -> vector<8x128xf32>
    %c0_17 = arith.constant 0 : index
    %c0_18 = arith.constant 0 : index
    %32 = vector.load %arg6[%c0_17, %c0_18] : memref<1x128xf32, #tpu.memory_space<vmem>>, vector<1x128xf32>
    %33 = vector.broadcast %32 : vector<1x128xf32> to vector<8x128xf32>
    %34 = arith.addf %31, %33 : vector<8x128xf32>
    %c0_19 = arith.constant 0 : index
    %c0_20 = arith.constant 0 : index
    %35 = vector.load %arg7[%c0_19, %c0_20] : memref<8x128xf32, #tpu.memory_space<vmem>>, vector<8x128xf32>
    tpu.vector_store %arg7[%c0_19, %c0_20], %34 {strides = array<i32>} : memref<8x128xf32, #tpu.memory_space<vmem>>, vector<8x128xf32>,
    return
  }
  func.func @transform_0(%arg0: i32) -> (i32, i32) {
    %c0_i32 = arith.constant 0 : i32
    %c0_i32_0 = arith.constant 0 : i32
    %c0_i32_1 = arith.constant 0 : i32
    return %c0_i32, %c0_i32_0 : i32, i32
  }
  func.func @transform_1(%arg0: i32) -> (i32, i32) {
    %c0_i32 = arith.constant 0 : i32
    %c0_i32_0 = arith.constant 0 : i32
    %c0_i32_1 = arith.constant 0 : i32
    return %c0_i32, %c0_i32_0 : i32, i32
  }
  func.func @transform_2(%arg0: i32) -> (i32, i32) {
    %c0_i32 = arith.constant 0 : i32
    %c0_i32_0 = arith.constant 0 : i32
    %c0_i32_1 = arith.constant 0 : i32
    return %c0_i32, %c0_i32_0 : i32, i32
  }
  func.func @transform_3(%arg0: i32) -> (i32, i32) {
    %c0_i32 = arith.constant 0 : i32
    %c0_i32_0 = arith.constant 0 : i32
    %c0_i32_1 = arith.constant 0 : i32
    return %c0_i32, %c0_i32_0 : i32, i32
  }
  func.func @transform_4(%arg0: i32) -> (i32, i32) {
    %c0_i32 = arith.constant 0 : i32
    %c0_i32_0 = arith.constant 0 : i32
    return %c0_i32, %arg0 : i32, i32
  }
  func.func @transform_5(%arg0: i32) -> (i32, i32) {
    %c0_i32 = arith.constant 0 : i32
    %c0_i32_0 = arith.constant 0 : i32
    return %c0_i32, %arg0 : i32, i32
  }
  func.func @transform_6(%arg0: i32) -> (i32, i32) {
    %c0_i32 = arith.constant 0 : i32
    %c0_i32_0 = arith.constant 0 : i32
    return %c0_i32, %arg0 : i32, i32
  }
}

</mosaic_0001>

<llo_original>
// kernel: tpu_custom_call.1
$region0: #{tpu_custom_call.1}
  #allocation0 [shape = 'u32[]', space=smem, size = 0x4, offset = 0x4, fixed_abs, tag = 'smem constant byte address 0x4 - core index']
  #allocation1 [shape = 'u32[144,128]{1,0:T(1,128)}', space=vmem, size = 0x12000, scoped, tag = 'internal scratch']
  %s0 = inlined_call_operand.hbm [shape: f32[8,128], index: 0, kind: input, shape index: {}]
  %s1 = inlined_call_operand.hbm [shape: f32[128,128], index: 1, kind: input, shape index: {}]
  %s2 = inlined_call_operand.vmem [shape: f32[1,128], index: 2, kind: input, shape index: {}]
  %s3 = inlined_call_operand.vmem [shape: f32[1,128], index: 3, kind: input, shape index: {}]
  %s4 = inlined_call_operand.hbm [shape: f32[128,128], index: 4, kind: input, shape index: {}]
  %s5 = inlined_call_operand.vmem [shape: f32[1,128], index: 5, kind: input, shape index: {}]
  %s6 = inlined_call_operand.hbm [shape: f32[8,128], index: 6, kind: output, shape index: {}]
  %s7 = sld [smem:[#allocation0]]
  $region46: #{tpu_custom_call.1} parent=0
    _
  %s9 = ssub.s32 1, %s7
  %s10 = scalar_select 0, %s9, %s7
  $region1: #{tpu_custom_call.1} parent=0
    #allocation2 [shape = 'u8[4096]{0}', space=vmem, size = 0x1000, scoped, tag = 'input window, operand 0, single buffered']
    #allocation3 [shape = 's32[1]{0}', space=sflag, size = 0x4, scoped, tag = 'scoped memory for tpu_custom_call.1']
    #allocation4 [shape = 's32[1]{0}', space=sflag, size = 0x4, scoped, tag = 'scoped memory for tpu_custom_call.1']
    #allocation5 [shape = 'u8[65536]{0}', space=vmem, size = 0x10000, scoped, tag = 'input window, operand 1, single buffered']
    #allocation6 [shape = 's32[1]{0}', space=sflag, size = 0x4, scoped, tag = 'scoped memory for tpu_custom_call.1']
    #allocation7 [shape = 'u8[65536]{0}', space=vmem, size = 0x10000, scoped, tag = 'input window, operand 4, single buffered']
    #allocation8 [shape = 'u8[4096]{0}', space=vmem, size = 0x1000, scoped, tag = 'output window, operand 0, single buffered']
    %11 = vsyncpa [#allocation3], 0
    %12 = vsyncpa [#allocation6], 0
    %13 = vsyncpa [#allocation4], 0
    // Predicated region
    $region2: #{tpu_custom_call.1} parent=1 // pred_check
      _
    $region3: #{tpu_custom_call.1} parent=1 // pred_check_branch
      %15 = sbr.rel (0) target = $region5
    $region4: #{tpu_custom_call.1} parent=1 // pred_region
      %s17 = ssub.s32 128, 128
      %18 = vsyncadd [#allocation3], %s17
      %s20 = sshll.u32 [#allocation2], 4
      %s21 = int_to_ptr.vmem [resolvable:$true] %s20
      %23 = dma.hbm_to_vmem [thread:$0]  %s0, 128, %s21, [#allocation3]
    $region5: #{tpu_custom_call.1} parent=1 // pred_fallthru
      _
    // Predicated region
    $region6: #{tpu_custom_call.1} parent=1 // pred_check
      _
    $region7: #{tpu_custom_call.1} parent=1 // pred_check_branch
      %25 = sbr.rel (0) target = $region9
    $region8: #{tpu_custom_call.1} parent=1 // pred_region
      %s27 = ssub.s32 2048, 2048
      %28 = vsyncadd [#allocation6], %s27
      %s29 = sshll.u32 [#allocation5], 4
      %s30 = int_to_ptr.vmem [resolvable:$true] %s29
      %35 = dma.hbm_to_vmem [thread:$0]  %s1, 2048, %s30, [#allocation6], 128, 128, 8
    $region9: #{tpu_custom_call.1} parent=1 // pred_fallthru
      _
    // Predicated region
    $region10: #{tpu_custom_call.1} parent=1 // pred_check
      _
    $region11: #{tpu_custom_call.1} parent=1 // pred_check_branch
      %37 = sbr.rel (0) target = $region13
    $region12: #{tpu_custom_call.1} parent=1 // pred_region
      _
    $region13: #{tpu_custom_call.1} parent=1 // pred_fallthru
      _
    // Predicated region
    $region14: #{tpu_custom_call.1} parent=1 // pred_check
      _
    $region15: #{tpu_custom_call.1} parent=1 // pred_check_branch
      %39 = sbr.rel (0) target = $region17
    $region16: #{tpu_custom_call.1} parent=1 // pred_region
      _
    $region17: #{tpu_custom_call.1} parent=1 // pred_fallthru
      _
    // Predicated region
    $region18: #{tpu_custom_call.1} parent=1 // pred_check
      _
    $region19: #{tpu_custom_call.1} parent=1 // pred_check_branch
      %41 = sbr.rel (0) target = $region21
    $region20: #{tpu_custom_call.1} parent=1 // pred_region
      %s43 = ssub.s32 2048, 2048
      %44 = vsyncadd [#allocation6], %s43
      %s45 = sshll.u32 [#allocation7], 4
      %s46 = int_to_ptr.vmem [resolvable:$true] %s45
      %51 = dma.hbm_to_vmem [thread:$0]  %s4, 2048, %s46, [#allocation6], 128, 128, 8
    $region21: #{tpu_custom_call.1} parent=1 // pred_fallthru
      _
    // Predicated region
    $region22: #{tpu_custom_call.1} parent=1 // pred_check
      _
    $region23: #{tpu_custom_call.1} parent=1 // pred_check_branch
      %53 = sbr.rel (0) target = $region25
    $region24: #{tpu_custom_call.1} parent=1 // pred_region
      _
    $region25: #{tpu_custom_call.1} parent=1 // pred_fallthru
      _
    // Predicated region
    $region26: #{tpu_custom_call.1} parent=1 // pred_check
      _
    $region27: #{tpu_custom_call.1} parent=1 // pred_check_branch
      %55 = sbr.rel (0) target = $region29
    $region28: #{tpu_custom_call.1} parent=1 // pred_region
      %56 = dma.done [#allocation3], 128
    $region29: #{tpu_custom_call.1} parent=1 // pred_fallthru
      _
    // Predicated region
    $region30: #{tpu_custom_call.1} parent=1 // pred_check
      _
    $region31: #{tpu_custom_call.1} parent=1 // pred_check_branch
      %58 = sbr.rel (0) target = $region33
    $region32: #{tpu_custom_call.1} parent=1 // pred_region
      %59 = dma.done [#allocation6], 2048
    $region33: #{tpu_custom_call.1} parent=1 // pred_fallthru
      _
    // Predicated region
    $region34: #{tpu_custom_call.1} parent=1 // pred_check
      _
    $region35: #{tpu_custom_call.1} parent=1 // pred_check_branch
      %61 = sbr.rel (0) target = $region37
    $region36: #{tpu_custom_call.1} parent=1 // pred_region
      %62 = dma.done [#allocation6], 2048
    $region37: #{tpu_custom_call.1} parent=1 // pred_fallthru
      _
    %v63 = vld [vmem:[#allocation2] sm:$0xff]
    %v64 = vld [vmem:[#allocation5] sm:$0xff]
    %v65 = vld [vmem:[#allocation5 + $0x8] sm:$0xff]
    %v66 = vld [vmem:[#allocation5 + $0x10] sm:$0xff]
    %v67 = vld [vmem:[#allocation5 + $0x18] sm:$0xff]
    %v68 = vld [vmem:[#allocation5 + $0x20] sm:$0xff]
    %v69 = vld [vmem:[#allocation5 + $0x28] sm:$0xff]
    %v70 = vld [vmem:[#allocation5 + $0x30] sm:$0xff]
    %v71 = vld [vmem:[#allocation5 + $0x38] sm:$0xff]
    %v72 = vld [vmem:[#allocation5 + $0x40] sm:$0xff]
    %v73 = vld [vmem:[#allocation5 + $0x48] sm:$0xff]
    %v74 = vld [vmem:[#allocation5 + $0x50] sm:$0xff]
    %v75 = vld [vmem:[#allocation5 + $0x58] sm:$0xff]
    %v76 = vld [vmem:[#allocation5 + $0x60] sm:$0xff]
    %v77 = vld [vmem:[#allocation5 + $0x68] sm:$0xff]
    %v78 = vld [vmem:[#allocation5 + $0x70] sm:$0xff]
    %v79 = vld [vmem:[#allocation5 + $0x78] sm:$0xff]
    %80 = vmatprep.subr.mxu0 0.0
    %81 = vmatpush1.msra.mxu0 %v64
    %82 = vmatprep.subr.mxu0 0.0
    %83 = vmatpush1.msra.mxu0 %v65
    %84 = vmatprep.subr.mxu0 0.0
    %85 = vmatpush1.msra.mxu0 %v66
    %86 = vmatprep.subr.mxu0 0.0
    %87 = vmatpush1.msra.mxu0 %v67
    %88 = vmatprep.subr.mxu0 0.0
    %89 = vmatpush1.msra.mxu0 %v68
    %90 = vmatprep.subr.mxu0 0.0
    %91 = vmatpush1.msra.mxu0 %v69
    %92 = vmatprep.subr.mxu0 0.0
    %93 = vmatpush1.msra.mxu0 %v70
    %94 = vmatprep.subr.mxu0 0.0
    %95 = vmatpush1.msra.mxu0 %v71
    %96 = vmatprep.subr.mxu0 0.0
    %97 = vmatpush1.msra.mxu0 %v72
    %98 = vmatprep.subr.mxu0 0.0
    %99 = vmatpush1.msra.mxu0 %v73
    %100 = vmatprep.subr.mxu0 0.0
    %101 = vmatpush1.msra.mxu0 %v74
    %102 = vmatprep.subr.mxu0 0.0
    %103 = vmatpush1.msra.mxu0 %v75
    %104 = vmatprep.subr.mxu0 0.0
    %105 = vmatpush1.msra.mxu0 %v76
    %106 = vmatprep.subr.mxu0 0.0
    %107 = vmatpush1.msra.mxu0 %v77
    %108 = vmatprep.subr.mxu0 0.0
    %109 = vmatpush1.msra.mxu0 %v78
    %110 = vmatprep.subr.mxu0 0.0
    %111 = vmatpush1.msra.mxu0 %v79
    %112 = vmatprep.subr.mxu0 0.0
    %113 = vmatpush1.msra.mxu0 0.0
    %114 = vmatprep.subr.mxu0 0.0
    %115 = vmatpush1.msra.mxu0 0.0
    %116 = vmatprep.subr.mxu0 0.0
    %117 = vmatpush1.msra.mxu0 0.0
    %118 = vmatprep.subr.mxu0 0.0
    %119 = vmatpush1.msra.mxu0 0.0
    %120 = vmatprep.subr.mxu0 0.0
    %121 = vmatpush1.msra.mxu0 0.0
    %122 = vmatprep.subr.mxu0 0.0
    %123 = vmatpush1.msra.mxu0 0.0
    %124 = vmatprep.subr.mxu0 0.0
    %125 = vmatpush1.msra.mxu0 0.0
    %126 = vmatprep.subr.mxu0 0.0
    %127 = vmatpush1.msra.mxu0 0.0
    %128 = vmatprep.subr.mxu0 0.0
    %129 = vmatpush1.msra.mxu0 0.0
    %130 = vmatprep.subr.mxu0 0.0
    %131 = vmatpush1.msra.mxu0 0.0
    %132 = vmatprep.subr.mxu0 0.0
    %133 = vmatpush1.msra.mxu0 0.0
    %134 = vmatprep.subr.mxu0 0.0
    %135 = vmatpush1.msra.mxu0 0.0
    %136 = vmatprep.subr.mxu0 0.0
    %137 = vmatpush1.msra.mxu0 0.0
    %138 = vmatprep.subr.mxu0 0.0
    %139 = vmatpush1.msra.mxu0 0.0
    %140 = vmatprep.subr.mxu0 0.0
    %141 = vmatpush1.msra.mxu0 0.0
    %142 = vmatprep.subr.mxu0 0.0
    %143 = vmatpush1.msra.mxu0 0.0
    %144 = vmatprep.mubr.f32.mxu0 0.0
    %145 = vmatmul.mubr.f32.gmra.mrb[0].mxu0 %v63
    %v146 = vpop.f32.mrb[0].mxu0
    %v147 = vadd.f32 0.0, %v146
    %v148 = vpop.f32.mrb[0].mxu0
    %149 = vdwg.mxu0
    %v150 = vrot.slane %v147, 4
    %v151 = vadd.f32 %v147, %v150
    %v152 = vrot.slane %v151, 2
    %v153 = vadd.f32 %v151, %v152
    %v154 = vrot.slane %v153, 1
    %v155 = vadd.f32 %v153, %v154
    %v156 = vrcp.pop 8.0
    %v157 = vmul.f32 %v155, %v156
    %v158 = vmul.f32 %v147, %v147
    %v159 = vrot.slane %v158, 4
    %v160 = vadd.f32 %v158, %v159
    %v161 = vrot.slane %v160, 2
    %v162 = vadd.f32 %v160, %v161
    %v163 = vrot.slane %v162, 1
    %v164 = vadd.f32 %v162, %v163
    %v165 = vmul.f32 %v164, %v156
    %v166 = vmul.f32 %v157, %v157
    %v167 = vsub.f32 %v165, %v166
    %v168 = vmax.f32 %v167, 0.0
    %v169 = vld [vmem:[%s2] sm:$0x1]
    %v170 = vadd.f32 %v168, 1e-05
    %v171 = vrsqrt.pop %v170
    %v172 = vmul.f32 %v169, %v171
    %v173 = vld [vmem:[%s3] sm:$0x1]
    %v174 = vmul.f32 %v157, %v172
    %v175 = vsub.f32 %v173, %v174
    %v177 = vlaneseq
    %v178 = vshrl.u32 %v177, 7
    %v179 = vsub.s32 0, %v178
    %v180 = vrot.slane %v172, %v179
    %v182 = vmul.f32 %v147, %v180
    %v184 = vlaneseq
    %v185 = vshrl.u32 %v184, 7
    %v186 = vsub.s32 0, %v185
    %v187 = vrot.slane %v175, %v186
    %v189 = vadd.f32 %v182, %v187
    %v190 = vmax.f32 %v189, 0.0
    %v191 = vld [vmem:[#allocation7] sm:$0xff]
    %v192 = vld [vmem:[#allocation7 + $0x8] sm:$0xff]
    %v193 = vld [vmem:[#allocation7 + $0x10] sm:$0xff]
    %v194 = vld [vmem:[#allocation7 + $0x18] sm:$0xff]
    %v195 = vld [vmem:[#allocation7 + $0x20] sm:$0xff]
    %v196 = vld [vmem:[#allocation7 + $0x28] sm:$0xff]
    %v197 = vld [vmem:[#allocation7 + $0x30] sm:$0xff]
    %v198 = vld [vmem:[#allocation7 + $0x38] sm:$0xff]
    %v199 = vld [vmem:[#allocation7 + $0x40] sm:$0xff]
    %v200 = vld [vmem:[#allocation7 + $0x48] sm:$0xff]
    %v201 = vld [vmem:[#allocation7 + $0x50] sm:$0xff]
    %v202 = vld [vmem:[#allocation7 + $0x58] sm:$0xff]
    %v203 = vld [vmem:[#allocation7 + $0x60] sm:$0xff]
    %v204 = vld [vmem:[#allocation7 + $0x68] sm:$0xff]
    %v205 = vld [vmem:[#allocation7 + $0x70] sm:$0xff]
    %v206 = vld [vmem:[#allocation7 + $0x78] sm:$0xff]
    %v207 = vld [vmem:[%s5] sm:$0x1]
    %v209 = vlaneseq
    %v210 = vshrl.u32 %v209, 7
    %v211 = vsub.s32 0, %v210
    %v212 = vrot.slane %v207, %v211
    %214 = vmatprep.subr.mxu0 0.0
    %215 = vmatpush1.msra.mxu0 %v191
    %216 = vmatprep.subr.mxu0 0.0
    %217 = vmatpush1.msra.mxu0 %v192
    %218 = vmatprep.subr.mxu0 0.0
    %219 = vmatpush1.msra.mxu0 %v193
    %220 = vmatprep.subr.mxu0 0.0
    %221 = vmatpush1.msra.mxu0 %v194
    %222 = vmatprep.subr.mxu0 0.0
    %223 = vmatpush1.msra.mxu0 %v195
    %224 = vmatprep.subr.mxu0 0.0
    %225 = vmatpush1.msra.mxu0 %v196
    %226 = vmatprep.subr.mxu0 0.0
    %227 = vmatpush1.msra.mxu0 %v197
    %228 = vmatprep.subr.mxu0 0.0
    %229 = vmatpush1.msra.mxu0 %v198
    %230 = vmatprep.subr.mxu0 0.0
    %231 = vmatpush1.msra.mxu0 %v199
    %232 = vmatprep.subr.mxu0 0.0
    %233 = vmatpush1.msra.mxu0 %v200
    %234 = vmatprep.subr.mxu0 0.0
    %235 = vmatpush1.msra.mxu0 %v201
    %236 = vmatprep.subr.mxu0 0.0
    %237 = vmatpush1.msra.mxu0 %v202
    %238 = vmatprep.subr.mxu0 0.0
    %239 = vmatpush1.msra.mxu0 %v203
    %240 = vmatprep.subr.mxu0 0.0
    %241 = vmatpush1.msra.mxu0 %v204
    %242 = vmatprep.subr.mxu0 0.0
    %243 = vmatpush1.msra.mxu0 %v205
    %244 = vmatprep.subr.mxu0 0.0
    %245 = vmatpush1.msra.mxu0 %v206
    %246 = vmatprep.subr.mxu0 0.0
    %247 = vmatpush1.msra.mxu0 0.0
    %248 = vmatprep.subr.mxu0 0.0
    %249 = vmatpush1.msra.mxu0 0.0
    %250 = vmatprep.subr.mxu0 0.0
    %251 = vmatpush1.msra.mxu0 0.0
    %252 = vmatprep.subr.mxu0 0.0
    %253 = vmatpush1.msra.mxu0 0.0
    %254 = vmatprep.subr.mxu0 0.0
    %255 = vmatpush1.msra.mxu0 0.0
    %256 = vmatprep.subr.mxu0 0.0
    %257 = vmatpush1.msra.mxu0 0.0
    %258 = vmatprep.subr.mxu0 0.0
    %259 = vmatpush1.msra.mxu0 0.0
    %260 = vmatprep.subr.mxu0 0.0
    %261 = vmatpush1.msra.mxu0 0.0
    %262 = vmatprep.subr.mxu0 0.0
    %263 = vmatpush1.msra.mxu0 0.0
    %264 = vmatprep.subr.mxu0 0.0
    %265 = vmatpush1.msra.mxu0 0.0
    %266 = vmatprep.subr.mxu0 0.0
    %267 = vmatpush1.msra.mxu0 0.0
    %268 = vmatprep.subr.mxu0 0.0
    %269 = vmatpush1.msra.mxu0 0.0
    %270 = vmatprep.subr.mxu0 0.0
    %271 = vmatpush1.msra.mxu0 0.0
    %272 = vmatprep.subr.mxu0 0.0
    %273 = vmatpush1.msra.mxu0 0.0
    %274 = vmatprep.subr.mxu0 0.0
    %275 = vmatpush1.msra.mxu0 0.0
    %276 = vmatprep.subr.mxu0 0.0
    %277 = vmatpush1.msra.mxu0 0.0
    %278 = vmatprep.mubr.f32.mxu0 0.0
    %279 = vmatmul.mubr.f32.gmra.mrb[0].mxu0 %v190
    %v280 = vpop.f32.mrb[0].mxu0
    %v281 = vadd.f32 %v212, %v280
    %v282 = vpop.f32.mrb[0].mxu0
    %283 = vdwg.mxu0
    %284 = vst [vmem:[#allocation8] sm:$0xff] %v281
    // Predicated region
    $region38: #{tpu_custom_call.1} parent=1 // pred_check
      _
    $region39: #{tpu_custom_call.1} parent=1 // pred_check_branch
      %286 = sbr.rel (0) target = $region41
    $region40: #{tpu_custom_call.1} parent=1 // pred_region
      %s288 = ssub.s32 128, 128
      %289 = vsyncadd [#allocation4], %s288
      %s291 = sshll.u32 [#allocation8], 4
      %s292 = int_to_ptr.vmem [resolvable:$true] %s291
      %294 = dma.vmem_to_hbm [thread:$0]  %s292, 128, %s6, [#allocation4]
    $region41: #{tpu_custom_call.1} parent=1 // pred_fallthru
      _
    // Predicated region
    $region42: #{tpu_custom_call.1} parent=1 // pred_check
      _
    $region43: #{tpu_custom_call.1} parent=1 // pred_check_branch
      %296 = sbr.rel (0) target = $region45
    $region44: #{tpu_custom_call.1} parent=1 // pred_region
      %297 = dma.done [#allocation4], 128
    $region45: #{tpu_custom_call.1} parent=1 // pred_fallthru
      _
    %298 = vsyncpa [#allocation3], 1
    %299 = vsyncpa [#allocation6], 1
    %300 = vsyncpa [#allocation4], 1

</llo_original>
